<compile_context>
chip_gen: v5e
topology: v5e:2x2
jax: 0.10.0
libtpu: 0.0.40
codegen_flags: <defaults>
</compile_context>

<pallas_src>
import functools

import jax
import jax.numpy as jnp
from jax.experimental import pallas as pl
from jax.experimental.pallas import tpu as pltpu

NEG_FILL = -100000000000.0  # matches .data.fill_(-100000000000.0)


def _round_up(v, m):
    return (v + m - 1) // m * m


def prepare_net_params(w, b):
    """One-time (model-init) padding of the linear params to TPU-friendly shapes.

    w: (D, N) float32, b: (N,) float32
    returns (w_pad (D_pad, N_pad) f32, b_pad (1, N_pad) f32, N)
    """
    D, N = w.shape
    D_pad = _round_up(D, 128)
    N_pad = _round_up(N, 128)
    w_pad = jnp.pad(w.astype(jnp.float32), ((0, D_pad - D), (0, N_pad - N)))
    b_pad = jnp.pad(b.astype(jnp.float32), (0, N_pad - N)).reshape(1, N_pad)
    return w_pad, b_pad, N


def _net_forward_kernel(t_ref, x_ref, w_ref, b_ref, o_ref, *, nc_per_task):
    # logits = x @ W  (f32 operands, f32 accumulation on the MXU)
    logits = jnp.dot(x_ref[...], w_ref[...], preferred_element_type=jnp.float32)

    # Task masking: keep columns in [t*nc, (t+1)*nc), fill the rest with -1e11.
    # Padded columns (>= n_outputs) fall outside the keep window -> NEG_FILL.
    # Mask is built on a single (1, N_pad) row and broadcast; bias is folded
    # into the masked store.
    t = t_ref[0]
    offset1 = t * nc_per_task
    offset2 = offset1 + nc_per_task
    col = jax.lax.broadcasted_iota(jnp.int32, (1, logits.shape[1]), 1)
    keep = (col >= offset1) & (col < offset2)
    o_ref[...] = jnp.where(keep, logits + b_ref[...], jnp.float32(NEG_FILL))


def net_forward(x, t, w_pad, b_pad, n_outputs, *, nc_per_task):
    """Pallas equivalent of Net.forward(x, t).

    x:      (B, 3, H, W) float32 (NCHW)
    t:      python/int (or traced) task id
    w_pad:  (D_pad, N_pad) float32  -- from prepare_net_params (cached)
    b_pad:  (1, N_pad) float32      -- from prepare_net_params (cached)
    returns (B, n_outputs) float32 logits with non-task columns set to -1e11.
    """
    B = x.shape[0]
    D = x.shape[1] * x.shape[2] * x.shape[3]
    D_pad, N_pad = w_pad.shape

    x_flat = x.reshape(B, D).astype(jnp.float32)
    if D_pad != D:
        x_flat = jnp.pad(x_flat, ((0, 0), (0, D_pad - D)))

    t_arr = jnp.asarray([t], dtype=jnp.int32)

    kernel = functools.partial(_net_forward_kernel, nc_per_task=nc_per_task)

    cost = pl.CostEstimate(
        flops=2 * B * D_pad * N_pad,
        transcendentals=0,
        bytes_accessed=4 * (B * D_pad + D_pad * N_pad + N_pad + B * N_pad),
    )

    out_pad = pl.pallas_call(
        kernel,
        out_shape=jax.ShapeDtypeStruct((B, N_pad), jnp.float32),
        grid_spec=pltpu.PrefetchScalarGridSpec(
            num_scalar_prefetch=1,      # t lands in SMEM, read as a scalar
            grid=(1,),                  # whole problem is one block (overhead-bound)
            in_specs=[
                pl.BlockSpec((B, D_pad), lambda i, t_ref: (0, 0)),
                pl.BlockSpec((D_pad, N_pad), lambda i, t_ref: (0, 0)),
                pl.BlockSpec((1, N_pad), lambda i, t_ref: (0, 0)),
            ],
            out_specs=pl.BlockSpec((B, N_pad), lambda i, t_ref: (0, 0)),
        ),
        compiler_params=pltpu.CompilerParams(
            dimension_semantics=("arbitrary",)),
        cost_estimate=cost,
    )(t_arr, x_flat, w_pad, b_pad)

    # Strip the lane padding back to the logical number of classes.
    return out_pad[:, :n_outputs]


if __name__ == "__main__":
    # Small shapes consistent with the module:
    #   n_inputs (spatial) = 16, channels = 3 (from memory_data), batch = 2,
    #   n_tasks = 4, nc_per_task = 2  ->  n_outputs = 8.
    B, C, H, W = 2, 3, 16, 16
    n_tasks, nc_per_task = 4, 2
    n_outputs = n_tasks * nc_per_task
    D = C * H * W

    key = jax.random.PRNGKey(0)
    kx, kw, kb = jax.random.split(key, 3)
    x = jax.random.normal(kx, (B, C, H, W), dtype=jnp.float32)
    # Deterministic synthetic parameters for the injected `net` (flatten + linear).
    w = jax.random.normal(kw, (D, n_outputs), dtype=jnp.float32) * 0.02
    b = jax.random.normal(kb, (n_outputs,), dtype=jnp.float32) * 0.01

    # One-time padding/caching of the linear params (model-init cost, not per call).
    w_pad, b_pad, _ = prepare_net_params(w, b)

    t = 1  # current task id
    out = net_forward(x, t, w_pad, b_pad, n_outputs, nc_per_task=nc_per_task)
    out = jax.block_until_ready(out)
    assert out.shape == (B, n_outputs)

    # Sanity check against a plain-JAX f32 reference.
    ref_logits = jnp.dot(x.reshape(B, D), w,
                         preferred_element_type=jnp.float32) + b
    o1, o2 = t * nc_per_task, (t + 1) * nc_per_task
    col = jnp.arange(n_outputs)
    ref = jnp.where((col >= o1) & (col < o2), ref_logits, jnp.float32(NEG_FILL))
    assert jnp.allclose(out, ref, atol=1e-4, rtol=1e-4)
    # Masked columns are exactly the fill value (as in the PyTorch module).
    assert bool(jnp.all(out[:, :o1] == NEG_FILL))
    assert bool(jnp.all(out[:, o2:] == NEG_FILL))

    # TODO(synk): observe()/training path (AUCMLoss, PESG optimizer, episodic
    # memory updates, backward) is host-side training logic, not a forward
    # kernel; only forward() is implemented here.
    print("KERNEL_OK")
</pallas_src>

<mosaic_0001>
module attributes {stable_mosaic.version = 11 : i64} {
  func.func @_net_forward_kernel(%arg0: i32, %arg1: memref<1xi32, #tpu.memory_space<smem>>, %arg2: memref<2x768xf32, #tpu.memory_space<vmem>>, %arg3: memref<768x128xf32, #tpu.memory_space<vmem>>, %arg4: memref<1x128xf32, #tpu.memory_space<vmem>>, %arg5: memref<2x128xf32, #tpu.memory_space<vmem>>) attributes {dimension_semantics = [#tpu.dimension_semantics<arbitrary>], iteration_bounds = array<i64: 1>, scalar_prefetch = 1 : i64, scratch_operands = 0 : i64, tpu.core_type = #tpu.core_type<tc>, window_params = [{pipeline_mode = #tpu.pipeline_mode<synchronous>, transform_indices = @transform_0, window_bounds = array<i64: 2, 768>}, {pipeline_mode = #tpu.pipeline_mode<synchronous>, transform_indices = @transform_1, window_bounds = array<i64: 768, 128>}, {pipeline_mode = #tpu.pipeline_mode<synchronous>, transform_indices = @transform_2, window_bounds = array<i64: 1, 128>}, {pipeline_mode = #tpu.pipeline_mode<synchronous>, transform_indices = @transform_3, window_bounds = array<i64: 2, 128>}]} {
    %c0 = arith.constant 0 : index
    %c0_0 = arith.constant 0 : index
    %0 = vector.load %arg2[%c0, %c0_0] : memref<2x768xf32, #tpu.memory_space<vmem>>, vector<2x768xf32>
    %c0_1 = arith.constant 0 : index
    %c0_2 = arith.constant 0 : index
    %1 = vector.load %arg3[%c0_1, %c0_2] : memref<768x128xf32, #tpu.memory_space<vmem>>, vector<768x128xf32>
    %cst = arith.constant dense<0.000000e+00> : vector<2x128xf32>
    %2 = tpu.matmul %0, %1, %cst {dimension_numbers = #tpu.dot_dimension_numbers<[1], [0], [0], [1], [0, 0, 1, 1], [], []>} : vector<2x768xf32>, vector<768x128xf32>, vector<2x128xf32> -> vector<2x128xf32>
    %c0_3 = arith.constant 0 : index
    %3 = memref.load %arg1[%c0_3] : memref<1xi32, #tpu.memory_space<smem>>
    %c2_i32 = arith.constant 2 : i32
    %4 = arith.muli %3, %c2_i32 : i32
    %c2_i32_4 = arith.constant 2 : i32
    %5 = arith.addi %4, %c2_i32_4 : i32
    %6 = tpu.iota {dimensions = array<i32: 1>} : vector<1x128xi32>
    %7 = vector.broadcast %4 : i32 to vector<1x128xi32>
    %8 = arith.cmpi sge, %6, %7 : vector<1x128xi32>
    %9 = vector.broadcast %5 : i32 to vector<1x128xi32>
    %10 = arith.cmpi slt, %6, %9 : vector<1x128xi32>
    %11 = arith.andi %8, %10 : vector<1x128xi1>
    %c0_5 = arith.constant 0 : index
    %c0_6 = arith.constant 0 : index
    %12 = vector.load %arg4[%c0_5, %c0_6] : memref<1x128xf32, #tpu.memory_space<vmem>>, vector<1x128xf32>
    %13 = vector.broadcast %12 : vector<1x128xf32> to vector<2x128xf32>
    %14 = arith.addf %2, %13 : vector<2x128xf32>
    %cst_7 = arith.constant -9.99999979E+10 : f32
    %15 = vector.shape_cast %11 : vector<1x128xi1> to vector<1x128xi1>
    %16 = vector.broadcast %15 : vector<1x128xi1> to vector<2x128xi1>
    %17 = vector.broadcast %cst_7 : f32 to vector<2x128xf32>
    %18 = arith.select %16, %14, %17 : vector<2x128xi1>, vector<2x128xf32>
    %c0_8 = arith.constant 0 : index
    %c0_9 = arith.constant 0 : index
    %19 = vector.load %arg5[%c0_8, %c0_9] : memref<2x128xf32, #tpu.memory_space<vmem>>, vector<2x128xf32>
    tpu.vector_store %arg5[%c0_8, %c0_9], %18 {strides = array<i32>} : memref<2x128xf32, #tpu.memory_space<vmem>>, vector<2x128xf32>,
    return
  }
  func.func @transform_0(%arg0: i32, %arg1: memref<1xi32, #tpu.memory_space<smem>>) -> (i32, i32) {
    %c0_i32 = arith.constant 0 : i32
    %c0_i32_0 = arith.constant 0 : i32
    %c0_i32_1 = arith.constant 0 : i32
    return %c0_i32, %c0_i32_0 : i32, i32
  }
  func.func @transform_1(%arg0: i32, %arg1: memref<1xi32, #tpu.memory_space<smem>>) -> (i32, i32) {
    %c0_i32 = arith.constant 0 : i32
    %c0_i32_0 = arith.constant 0 : i32
    %c0_i32_1 = arith.constant 0 : i32
    return %c0_i32, %c0_i32_0 : i32, i32
  }
  func.func @transform_2(%arg0: i32, %arg1: memref<1xi32, #tpu.memory_space<smem>>) -> (i32, i32) {
    %c0_i32 = arith.constant 0 : i32
    %c0_i32_0 = arith.constant 0 : i32
    %c0_i32_1 = arith.constant 0 : i32
    return %c0_i32, %c0_i32_0 : i32, i32
  }
  func.func @transform_3(%arg0: i32, %arg1: memref<1xi32, #tpu.memory_space<smem>>) -> (i32, i32) {
    %c0_i32 = arith.constant 0 : i32
    %c0_i32_0 = arith.constant 0 : i32
    %c0_i32_1 = arith.constant 0 : i32
    return %c0_i32, %c0_i32_0 : i32, i32
  }
}

</mosaic_0001>

<llo_original>
// kernel: tpu_custom_call.1
$region0: #{tpu_custom_call.1}
  #allocation0 [shape = 'u32[]', space=smem, size = 0x4, offset = 0x4, fixed_abs, tag = 'smem constant byte address 0x4 - core index']
  #allocation1 [shape = 'u32[72,128]{1,0:T(1,128)}', space=vmem, size = 0x9000, scoped, tag = 'internal scratch']
  #allocation2 [shape = 's32[1]{0}', space=sflag, size = 0x4, scoped, tag = 'scoped memory for tpu_custom_call.1']
  #allocation3 [shape = 's32[1]{0:T(128)S(6)}', space=smem, size = 0x200, scoped, tag = 'prefetched SMEM operand 0']
  %s0 = inlined_call_operand.<no memory space> [shape: s32[1], index: 0, kind: input, shape index: {}]
  %s1 = inlined_call_operand.hbm [shape: f32[2,768], index: 1, kind: input, shape index: {}]
  %s2 = inlined_call_operand.hbm [shape: f32[768,128], index: 2, kind: input, shape index: {}]
  %s3 = inlined_call_operand.vmem [shape: f32[1,128], index: 3, kind: input, shape index: {}]
  %s4 = inlined_call_operand.hbm [shape: f32[2,128], index: 4, kind: output, shape index: {}]
  %s5 = sld [smem:[#allocation0]]
  $region30: #{tpu_custom_call.1} parent=0
    _
  %s7 = ssub.s32 1, %s5
  %s8 = scalar_select 0, %s7, %s5
  %9 = sst [smem:[#allocation3]] %s0
  $region1: #{tpu_custom_call.1} parent=0
    #allocation4 [shape = 'u8[6144]{0}', space=vmem, size = 0x1800, scoped, tag = 'input window, operand 1, single buffered']
    #allocation5 [shape = 's32[1]{0}', space=sflag, size = 0x4, scoped, tag = 'scoped memory for tpu_custom_call.1']
    #allocation6 [shape = 's32[1]{0}', space=sflag, size = 0x4, scoped, tag = 'scoped memory for tpu_custom_call.1']
    #allocation7 [shape = 'u8[393216]{0}', space=vmem, size = 0x60000, scoped, tag = 'input window, operand 2, single buffered']
    #allocation8 [shape = 's32[1]{0}', space=sflag, size = 0x4, scoped, tag = 'scoped memory for tpu_custom_call.1']
    #allocation9 [shape = 'u8[1024]{0}', space=vmem, size = 0x400, scoped, tag = 'output window, operand 0, single buffered']
    %10 = vsyncpa [#allocation5], 0
    %11 = vsyncpa [#allocation8], 0
    %12 = vsyncpa [#allocation6], 0
    // Predicated region
    $region2: #{tpu_custom_call.1} parent=1 // pred_check
      _
    $region3: #{tpu_custom_call.1} parent=1 // pred_check_branch
      %14 = sbr.rel (0) target = $region5
    $region4: #{tpu_custom_call.1} parent=1 // pred_region
      %16 = vsyncadd [#allocation5], 0
      %s18 = sshll.u32 %s1, 4
      %s19 = int_to_ptr.hbm [resolvable:$true] %s18
      %s20 = sshll.u32 [#allocation4], 4
      %s21 = int_to_ptr.vmem [resolvable:$true] %s20
      %23 = dma.hbm_to_vmem [thread:$0]  %s19, 192, %s21, [#allocation5]
    $region5: #{tpu_custom_call.1} parent=1 // pred_fallthru
      _
    // Predicated region
    $region6: #{tpu_custom_call.1} parent=1 // pred_check
      _
    $region7: #{tpu_custom_call.1} parent=1 // pred_check_branch
      %25 = sbr.rel (0) target = $region9
    $region8: #{tpu_custom_call.1} parent=1 // pred_region
      %27 = vsyncadd [#allocation8], 0
      %s28 = sshll.u32 %s2, 4
      %s29 = int_to_ptr.hbm [resolvable:$true] %s28
      %s30 = sshll.u32 [#allocation7], 4
      %s31 = int_to_ptr.vmem [resolvable:$true] %s30
      %36 = dma.hbm_to_vmem [thread:$0]  %s29, 12288, %s31, [#allocation8], 128, 128, 8
    $region9: #{tpu_custom_call.1} parent=1 // pred_fallthru
      _
    // Predicated region
    $region10: #{tpu_custom_call.1} parent=1 // pred_check
      _
    $region11: #{tpu_custom_call.1} parent=1 // pred_check_branch
      %38 = sbr.rel (0) target = $region13
    $region12: #{tpu_custom_call.1} parent=1 // pred_region
      _
    $region13: #{tpu_custom_call.1} parent=1 // pred_fallthru
      _
    // Predicated region
    $region14: #{tpu_custom_call.1} parent=1 // pred_check
      _
    $region15: #{tpu_custom_call.1} parent=1 // pred_check_branch
      %40 = sbr.rel (0) target = $region17
    $region16: #{tpu_custom_call.1} parent=1 // pred_region
      %42 = dma.done [#allocation5], 192
    $region17: #{tpu_custom_call.1} parent=1 // pred_fallthru
      _
    // Predicated region
    $region18: #{tpu_custom_call.1} parent=1 // pred_check
      _
    $region19: #{tpu_custom_call.1} parent=1 // pred_check_branch
      %44 = sbr.rel (0) target = $region21
    $region20: #{tpu_custom_call.1} parent=1 // pred_region
      %46 = dma.done [#allocation8], 12288
    $region21: #{tpu_custom_call.1} parent=1 // pred_fallthru
      _
    %v47 = vld [vmem:[#allocation4] sm:$0xff]
    %v48 = vld [vmem:[#allocation4 + $0x8] sm:$0xf]
    %v49 = vld [vmem:[#allocation7] sm:$0xff]
    %v50 = vld [vmem:[#allocation7 + $0x8] sm:$0xff]
    %v51 = vld [vmem:[#allocation7 + $0x10] sm:$0xff]
    %v52 = vld [vmem:[#allocation7 + $0x18] sm:$0xff]
    %v53 = vld [vmem:[#allocation7 + $0x20] sm:$0xff]
    %v54 = vld [vmem:[#allocation7 + $0x28] sm:$0xff]
    %v55 = vld [vmem:[#allocation7 + $0x30] sm:$0xff]
    %v56 = vld [vmem:[#allocation7 + $0x38] sm:$0xff]
    %v57 = vld [vmem:[#allocation7 + $0x40] sm:$0xff]
    %v58 = vld [vmem:[#allocation7 + $0x48] sm:$0xff]
    %v59 = vld [vmem:[#allocation7 + $0x50] sm:$0xff]
    %v60 = vld [vmem:[#allocation7 + $0x58] sm:$0xff]
    %v61 = vld [vmem:[#allocation7 + $0x60] sm:$0xff]
    %v62 = vld [vmem:[#allocation7 + $0x68] sm:$0xff]
    %v63 = vld [vmem:[#allocation7 + $0x70] sm:$0xff]
    %v64 = vld [vmem:[#allocation7 + $0x78] sm:$0xff]
    %v65 = vld [vmem:[#allocation7 + $0x80] sm:$0xff]
    %v66 = vld [vmem:[#allocation7 + $0x88] sm:$0xff]
    %v67 = vld [vmem:[#allocation7 + $0x90] sm:$0xff]
    %v68 = vld [vmem:[#allocation7 + $0x98] sm:$0xff]
    %v69 = vld [vmem:[#allocation7 + $0xa0] sm:$0xff]
    %v70 = vld [vmem:[#allocation7 + $0xa8] sm:$0xff]
    %v71 = vld [vmem:[#allocation7 + $0xb0] sm:$0xff]
    %v72 = vld [vmem:[#allocation7 + $0xb8] sm:$0xff]
    %v73 = vld [vmem:[#allocation7 + $0xc0] sm:$0xff]
    %v74 = vld [vmem:[#allocation7 + $0xc8] sm:$0xff]
    %v75 = vld [vmem:[#allocation7 + $0xd0] sm:$0xff]
    %v76 = vld [vmem:[#allocation7 + $0xd8] sm:$0xff]
    %v77 = vld [vmem:[#allocation7 + $0xe0] sm:$0xff]
    %v78 = vld [vmem:[#allocation7 + $0xe8] sm:$0xff]
    %v79 = vld [vmem:[#allocation7 + $0xf0] sm:$0xff]
    %v80 = vld [vmem:[#allocation7 + $0xf8] sm:$0xff]
    %v81 = vld [vmem:[#allocation7 + $0x100] sm:$0xff]
    %v82 = vld [vmem:[#allocation7 + $0x108] sm:$0xff]
    %v83 = vld [vmem:[#allocation7 + $0x110] sm:$0xff]
    %v84 = vld [vmem:[#allocation7 + $0x118] sm:$0xff]
    %v85 = vld [vmem:[#allocation7 + $0x120] sm:$0xff]
    %v86 = vld [vmem:[#allocation7 + $0x128] sm:$0xff]
    %v87 = vld [vmem:[#allocation7 + $0x130] sm:$0xff]
    %v88 = vld [vmem:[#allocation7 + $0x138] sm:$0xff]
    %v89 = vld [vmem:[#allocation7 + $0x140] sm:$0xff]
    %v90 = vld [vmem:[#allocation7 + $0x148] sm:$0xff]
    %v91 = vld [vmem:[#allocation7 + $0x150] sm:$0xff]
    %v92 = vld [vmem:[#allocation7 + $0x158] sm:$0xff]
    %v93 = vld [vmem:[#allocation7 + $0x160] sm:$0xff]
    %v94 = vld [vmem:[#allocation7 + $0x168] sm:$0xff]
    %v95 = vld [vmem:[#allocation7 + $0x170] sm:$0xff]
    %v96 = vld [vmem:[#allocation7 + $0x178] sm:$0xff]
    %v97 = vld [vmem:[#allocation7 + $0x180] sm:$0xff]
    %v98 = vld [vmem:[#allocation7 + $0x188] sm:$0xff]
    %v99 = vld [vmem:[#allocation7 + $0x190] sm:$0xff]
    %v100 = vld [vmem:[#allocation7 + $0x198] sm:$0xff]
    %v101 = vld [vmem:[#allocation7 + $0x1a0] sm:$0xff]
    %v102 = vld [vmem:[#allocation7 + $0x1a8] sm:$0xff]
    %v103 = vld [vmem:[#allocation7 + $0x1b0] sm:$0xff]
    %v104 = vld [vmem:[#allocation7 + $0x1b8] sm:$0xff]
    %v105 = vld [vmem:[#allocation7 + $0x1c0] sm:$0xff]
    %v106 = vld [vmem:[#allocation7 + $0x1c8] sm:$0xff]
    %v107 = vld [vmem:[#allocation7 + $0x1d0] sm:$0xff]
    %v108 = vld [vmem:[#allocation7 + $0x1d8] sm:$0xff]
    %v109 = vld [vmem:[#allocation7 + $0x1e0] sm:$0xff]
    %v110 = vld [vmem:[#allocation7 + $0x1e8] sm:$0xff]
    %v111 = vld [vmem:[#allocation7 + $0x1f0] sm:$0xff]
    %v112 = vld [vmem:[#allocation7 + $0x1f8] sm:$0xff]
    %v113 = vld [vmem:[#allocation7 + $0x200] sm:$0xff]
    %v114 = vld [vmem:[#allocation7 + $0x208] sm:$0xff]
    %v115 = vld [vmem:[#allocation7 + $0x210] sm:$0xff]
    %v116 = vld [vmem:[#allocation7 + $0x218] sm:$0xff]
    %v117 = vld [vmem:[#allocation7 + $0x220] sm:$0xff]
    %v118 = vld [vmem:[#allocation7 + $0x228] sm:$0xff]
    %v119 = vld [vmem:[#allocation7 + $0x230] sm:$0xff]
    %v120 = vld [vmem:[#allocation7 + $0x238] sm:$0xff]
    %v121 = vld [vmem:[#allocation7 + $0x240] sm:$0xff]
    %v122 = vld [vmem:[#allocation7 + $0x248] sm:$0xff]
    %v123 = vld [vmem:[#allocation7 + $0x250] sm:$0xff]
    %v124 = vld [vmem:[#allocation7 + $0x258] sm:$0xff]
    %v125 = vld [vmem:[#allocation7 + $0x260] sm:$0xff]
    %v126 = vld [vmem:[#allocation7 + $0x268] sm:$0xff]
    %v127 = vld [vmem:[#allocation7 + $0x270] sm:$0xff]
    %v128 = vld [vmem:[#allocation7 + $0x278] sm:$0xff]
    %v129 = vld [vmem:[#allocation7 + $0x280] sm:$0xff]
    %v130 = vld [vmem:[#allocation7 + $0x288] sm:$0xff]
    %v131 = vld [vmem:[#allocation7 + $0x290] sm:$0xff]
    %v132 = vld [vmem:[#allocation7 + $0x298] sm:$0xff]
    %v133 = vld [vmem:[#allocation7 + $0x2a0] sm:$0xff]
    %v134 = vld [vmem:[#allocation7 + $0x2a8] sm:$0xff]
    %v135 = vld [vmem:[#allocation7 + $0x2b0] sm:$0xff]
    %v136 = vld [vmem:[#allocation7 + $0x2b8] sm:$0xff]
    %v137 = vld [vmem:[#allocation7 + $0x2c0] sm:$0xff]
    %v138 = vld [vmem:[#allocation7 + $0x2c8] sm:$0xff]
    %v139 = vld [vmem:[#allocation7 + $0x2d0] sm:$0xff]
    %v140 = vld [vmem:[#allocation7 + $0x2d8] sm:$0xff]
    %v141 = vld [vmem:[#allocation7 + $0x2e0] sm:$0xff]
    %v142 = vld [vmem:[#allocation7 + $0x2e8] sm:$0xff]
    %v143 = vld [vmem:[#allocation7 + $0x2f0] sm:$0xff]
    %v144 = vld [vmem:[#allocation7 + $0x2f8] sm:$0xff]
    %s145 = sld [smem:[#allocation3]]
    %s146 = smul.u32 %s145, 2
    %s147 = sadd.s32 %s146, 2
    %v148 = vlaneseq
    %v149 = vand.u32 %v148, 127
    %v150 = vstv %s146
    %vm151 = vcmp.ge.s32.totalorder %v149, %v150
    %v152 = vstv %s147
    %vm153 = vcmp.lt.s32.totalorder %v149, %v152
    %vm154 = vmand %vm151, %vm153
    %v155 = vld [vmem:[%s3] sm:$0x1]
    %v157 = vperm.slane %v155, 0
    %161 = vst [vmem:[#allocation1] ss:$4 sm:$0xff] %v47
    %s162 = scalar_lea.vmem [#allocation1], 32
    %163 = vst [vmem:[%s162] ss:$4 sm:$0xff] %v48
    %v164 = vld.sshfl [vmem:[#allocation1] sm:$0xff pattern:$0x73625140]
    %v165 = vld.sshfl [vmem:[#allocation1 + $0x8] sm:$0xff pattern:$0x73625140]
    %v166 = vld.sshfl [vmem:[#allocation1 + $0x10] sm:$0xff pattern:$0x73625140]
    %v167 = vld.sshfl [vmem:[#allocation1 + $0x18] sm:$0xff pattern:$0x73625140]
    %v168 = vld.sshfl [vmem:[#allocation1 + $0x20] sm:$0xff pattern:$0x73625140]
    %v169 = vld.sshfl [vmem:[#allocation1 + $0x28] sm:$0xff pattern:$0x73625140]
    %176 = vmatpush.msra.mxu0 %v64
    %177 = vmatpush.msra.mxu0 %v63
    %178 = vmatpush.msra.mxu0 %v62
    %179 = vmatpush.msra.mxu0 %v61
    %180 = vmatpush.msra.mxu0 %v60
    %181 = vmatpush.msra.mxu0 %v59
    %182 = vmatpush.msra.mxu0 %v58
    %183 = vmatpush.msra.mxu0 %v57
    %184 = vmatpush.msra.mxu0 %v56
    %185 = vmatpush.msra.mxu0 %v55
    %186 = vmatpush.msra.mxu0 %v54
    %187 = vmatpush.msra.mxu0 %v53
    %188 = vmatpush.msra.mxu0 %v52
    %189 = vmatpush.msra.mxu0 %v51
    %190 = vmatpush.msra.mxu0 %v50
    %191 = vmatpush.msra.mxu0 %v49
    %192 = vmatmul.f32.gmra.mxu0 %v164
    %v193 = vpop.f32.mrf.mxu0
    %v194 = vadd.f32 %v157, %v193
    %195 = vdwg.mxu0
    %196 = vmatpush.msra.mxu0 %v80
    %197 = vmatpush.msra.mxu0 %v79
    %198 = vmatpush.msra.mxu0 %v78
    %199 = vmatpush.msra.mxu0 %v77
    %200 = vmatpush.msra.mxu0 %v76
    %201 = vmatpush.msra.mxu0 %v75
    %202 = vmatpush.msra.mxu0 %v74
    %203 = vmatpush.msra.mxu0 %v73
    %204 = vmatpush.msra.mxu0 %v72
    %205 = vmatpush.msra.mxu0 %v71
    %206 = vmatpush.msra.mxu0 %v70
    %207 = vmatpush.msra.mxu0 %v69
    %208 = vmatpush.msra.mxu0 %v68
    %209 = vmatpush.msra.mxu0 %v67
    %210 = vmatpush.msra.mxu0 %v66
    %211 = vmatpush.msra.mxu0 %v65
    %212 = vmatmul.f32.gmra.mxu0 %v165
    %v213 = vpop.f32.mrf.mxu0
    %v214 = vadd.f32 %v194, %v213
    %215 = vdwg.mxu0
    %216 = vmatpush.msra.mxu0 %v96
    %217 = vmatpush.msra.mxu0 %v95
    %218 = vmatpush.msra.mxu0 %v94
    %219 = vmatpush.msra.mxu0 %v93
    %220 = vmatpush.msra.mxu0 %v92
    %221 = vmatpush.msra.mxu0 %v91
    %222 = vmatpush.msra.mxu0 %v90
    %223 = vmatpush.msra.mxu0 %v89
    %224 = vmatpush.msra.mxu0 %v88
    %225 = vmatpush.msra.mxu0 %v87
    %226 = vmatpush.msra.mxu0 %v86
    %227 = vmatpush.msra.mxu0 %v85
    %228 = vmatpush.msra.mxu0 %v84
    %229 = vmatpush.msra.mxu0 %v83
    %230 = vmatpush.msra.mxu0 %v82
    %231 = vmatpush.msra.mxu0 %v81
    %232 = vmatmul.f32.gmra.mxu0 %v166
    %v233 = vpop.f32.mrf.mxu0
    %v234 = vadd.f32 %v214, %v233
    %235 = vdwg.mxu0
    %236 = vmatpush.msra.mxu0 %v112
    %237 = vmatpush.msra.mxu0 %v111
    %238 = vmatpush.msra.mxu0 %v110
    %239 = vmatpush.msra.mxu0 %v109
    %240 = vmatpush.msra.mxu0 %v108
    %241 = vmatpush.msra.mxu0 %v107
    %242 = vmatpush.msra.mxu0 %v106
    %243 = vmatpush.msra.mxu0 %v105
    %244 = vmatpush.msra.mxu0 %v104
    %245 = vmatpush.msra.mxu0 %v103
    %246 = vmatpush.msra.mxu0 %v102
    %247 = vmatpush.msra.mxu0 %v101
    %248 = vmatpush.msra.mxu0 %v100
    %249 = vmatpush.msra.mxu0 %v99
    %250 = vmatpush.msra.mxu0 %v98
    %251 = vmatpush.msra.mxu0 %v97
    %252 = vmatmul.f32.gmra.mxu0 %v167
    %v253 = vpop.f32.mrf.mxu0
    %v254 = vadd.f32 %v234, %v253
    %255 = vdwg.mxu0
    %256 = vmatpush.msra.mxu0 %v128
    %257 = vmatpush.msra.mxu0 %v127
    %258 = vmatpush.msra.mxu0 %v126
    %259 = vmatpush.msra.mxu0 %v125
    %260 = vmatpush.msra.mxu0 %v124
    %261 = vmatpush.msra.mxu0 %v123
    %262 = vmatpush.msra.mxu0 %v122
    %263 = vmatpush.msra.mxu0 %v121
    %264 = vmatpush.msra.mxu0 %v120
    %265 = vmatpush.msra.mxu0 %v119
    %266 = vmatpush.msra.mxu0 %v118
    %267 = vmatpush.msra.mxu0 %v117
    %268 = vmatpush.msra.mxu0 %v116
    %269 = vmatpush.msra.mxu0 %v115
    %270 = vmatpush.msra.mxu0 %v114
    %271 = vmatpush.msra.mxu0 %v113
    %272 = vmatmul.f32.gmra.mxu0 %v168
    %v273 = vpop.f32.mrf.mxu0
    %v274 = vadd.f32 %v254, %v273
    %275 = vdwg.mxu0
    %276 = vmatpush.msra.mxu0 %v144
    %277 = vmatpush.msra.mxu0 %v143
    %278 = vmatpush.msra.mxu0 %v142
    %279 = vmatpush.msra.mxu0 %v141
    %280 = vmatpush.msra.mxu0 %v140
    %281 = vmatpush.msra.mxu0 %v139
    %282 = vmatpush.msra.mxu0 %v138
    %283 = vmatpush.msra.mxu0 %v137
    %284 = vmatpush.msra.mxu0 %v136
    %285 = vmatpush.msra.mxu0 %v135
    %286 = vmatpush.msra.mxu0 %v134
    %287 = vmatpush.msra.mxu0 %v133
    %288 = vmatpush.msra.mxu0 %v132
    %289 = vmatpush.msra.mxu0 %v131
    %290 = vmatpush.msra.mxu0 %v130
    %291 = vmatpush.msra.mxu0 %v129
    %292 = vmatmul.f32.gmra.mxu0 %v169
    %v293 = vpop.f32.mrf.mxu0
    %v294 = vadd.f32 %v274, %v293
    %295 = vdwg.mxu0
    %v296 = vsel %vm154, 1, 0
    %vm297 = vcmp.eq.s32.totalorder %v296, 1
    %v298 = vsel %vm297, %v294, -1e+11
    %299 = vst [vmem:[#allocation9] sm:$0x3] %v298
    // Predicated region
    $region22: #{tpu_custom_call.1} parent=1 // pred_check
      _
    $region23: #{tpu_custom_call.1} parent=1 // pred_check_branch
      %301 = sbr.rel (0) target = $region25
    $region24: #{tpu_custom_call.1} parent=1 // pred_region
      %303 = vsyncadd [#allocation6], 0
      %s305 = sshll.u32 [#allocation9], 4
      %s306 = int_to_ptr.vmem [resolvable:$true] %s305
      %s307 = sshll.u32 %s4, 4
      %s308 = int_to_ptr.hbm [resolvable:$true] %s307
      %310 = dma.vmem_to_hbm [thread:$0]  %s306, 32, %s308, [#allocation6]
    $region25: #{tpu_custom_call.1} parent=1 // pred_fallthru
      _
    // Predicated region
    $region26: #{tpu_custom_call.1} parent=1 // pred_check
      _
    $region27: #{tpu_custom_call.1} parent=1 // pred_check_branch
      %312 = sbr.rel (0) target = $region29
    $region28: #{tpu_custom_call.1} parent=1 // pred_region
      %314 = dma.done [#allocation6], 32
    $region29: #{tpu_custom_call.1} parent=1 // pred_fallthru
      _
    %315 = vsyncpa [#allocation5], 1
    %316 = vsyncpa [#allocation8], 1
    %317 = vsyncpa [#allocation6], 1

</llo_original>
